<compile_context>
chip_gen: v7x
topology: tpu7x:2x2x1
jax: 0.10.0
libtpu: 0.0.40
codegen_flags: <defaults>
</compile_context>

<pallas_src>
import math
import functools

import numpy as np
import jax
import jax.numpy as jnp
from jax import lax
from jax.experimental import pallas as pl
from jax.experimental.pallas import tpu as pltpu


# ---------------------------------------------------------------------------
# pltpu.roll convention probe (defensive: kernel is correct either way).
# jnp.roll convention means out[i] = in[(i - shift) % N].
# ---------------------------------------------------------------------------
_ROLL_IS_JNP = None


def _roll_convention_is_jnp():
    global _ROLL_IS_JNP
    if _ROLL_IS_JNP is None:
        def _probe(x_ref, o_ref):
            o_ref[...] = pltpu.roll(x_ref[...], shift=1, axis=1)
        try:
            xp = jnp.tile(jnp.arange(128, dtype=jnp.float32)[None, :], (8, 1))
            yp = pl.pallas_call(
                _probe, out_shape=jax.ShapeDtypeStruct((8, 128), jnp.float32))(xp)
            _ROLL_IS_JNP = bool(jax.device_get(yp)[0, 0] == 127.0)
        except Exception:
            return True  # cannot probe (e.g. under tracing); assume jnp.roll
    return _ROLL_IS_JNP


# ---------------------------------------------------------------------------
# Kernels
# ---------------------------------------------------------------------------
def _conv_fused_kernel(x_ref, w_ref, b_ref, o_ref):
    # Small-L path: single fused (C_out, CK) x (CK, lane_tile) MXU dot.
    acc = jnp.dot(w_ref[...], x_ref[...], preferred_element_type=jnp.float32)
    o_ref[...] = (acc + b_ref[...]).astype(o_ref.dtype)


def _conv_halo_kernel(x_ref, w_ref, b_ref, o_ref, prev_ref, *,
                      kernel_size, dilation, roll_is_jnp):
    # x_ref:    (C_in, T)       current non-overlapping chunk (batch squeezed)
    # w_ref:    (K, C_out, C_in)
    # b_ref:    (C_out, 1)      f32 bias
    # o_ref:    (C_out, T)
    # prev_ref: (C_in, T)       previous chunk of the SAME batch (carry scratch)
    t = pl.program_id(1)

    @pl.when(t == 0)
    def _():  # causal left padding: "previous chunk" is zeros at tile 0
        prev_ref[...] = jnp.zeros_like(prev_ref)

    xc = x_ref[...]
    prev = prev_ref[...]
    c_in, T = xc.shape
    c_out = o_ref.shape[0]

    lane = lax.broadcasted_iota(jnp.int32, (c_in, T), 1)

    acc = jnp.zeros((c_out, T), jnp.float32)
    for k in range(kernel_size):
        d = (kernel_size - 1 - k) * dilation    # left shift (in lanes) for tap k
        if d == 0:
            tap = xc
        else:
            # tap[i] = xc[i - d] for i >= d, prev[T - d + i] for i < d
            mixed = jnp.where(lane >= T - d, prev, xc)
            shift = d if roll_is_jnp else T - d
            tap = pltpu.roll(mixed, shift=shift, axis=1)
        acc = acc + jnp.dot(w_ref[k], tap, preferred_element_type=jnp.float32)

    o_ref[...] = (acc + b_ref[...]).astype(o_ref.dtype)
    prev_ref[...] = xc                           # carry for the next tile


# ---------------------------------------------------------------------------
# Wrappers
# ---------------------------------------------------------------------------
def _forward_halo(x, weight, bias_f32, *, K, dilation, cd, lane_tile, vmem_limit):
    B, C_in, L = x.shape
    C_out = weight.shape[0]

    n_tiles = -(-L // lane_tile)
    L_pad = n_tiles * lane_tile
    xp = x if L_pad == L else jnp.pad(x, ((0, 0), (0, 0), (0, L_pad - L)))
    xp = xp.astype(cd)
    w_t = jnp.transpose(weight, (2, 0, 1)).astype(cd)          # (K, C_out, C_in)

    roll_is_jnp = True if K == 1 else _roll_convention_is_jnp()
    kernel = functools.partial(_conv_halo_kernel, kernel_size=K,
                               dilation=dilation, roll_is_jnp=roll_is_jnp)

    out_isz = np.dtype(x.dtype).itemsize
    flops = int(2 * B * C_out * C_in * K * L_pad)
    bytes_accessed = int(xp.size * xp.dtype.itemsize + w_t.size * w_t.dtype.itemsize
                         + bias_f32.size * 4 + B * C_out * L_pad * out_isz)

    out = pl.pallas_call(
        kernel,
        out_shape=jax.ShapeDtypeStruct((B, C_out, L_pad), x.dtype),
        grid_spec=pltpu.PrefetchScalarGridSpec(
            num_scalar_prefetch=0,
            grid=(B, n_tiles),
            in_specs=[
                pl.BlockSpec((None, C_in, lane_tile), lambda b, t: (b, 0, t)),
                pl.BlockSpec((K, C_out, C_in), lambda b, t: (0, 0, 0)),
                pl.BlockSpec((C_out, 1), lambda b, t: (0, 0)),
            ],
            out_specs=pl.BlockSpec((None, C_out, lane_tile), lambda b, t: (b, 0, t)),
            scratch_shapes=[pltpu.VMEM((C_in, lane_tile), cd)],
        ),
        compiler_params=pltpu.CompilerParams(
            dimension_semantics=("parallel", "arbitrary"),
            vmem_limit_bytes=vmem_limit),
        cost_estimate=pl.CostEstimate(flops=flops, transcendentals=0,
                                      bytes_accessed=bytes_accessed),
    )(xp, w_t, bias_f32)

    return out if L_pad == L else out[:, :, :L]


def _forward_im2col(x, weight, bias_f32, *, K, dilation, padding, cd,
                    vmem_budget_bytes, vmem_limit, lane_tile, max_lane_tile):
    # Small-L fallback: fold batch into lanes, im2col the K taps in the wrapper.
    B, C_in, L = x.shape
    C_out = weight.shape[0]

    xpad = jnp.pad(x, ((0, 0), (0, 0), (padding, 0)))
    taps = [xpad[:, :, k * dilation:k * dilation + L] for k in range(K)]
    xcol = jnp.stack(taps, axis=2).reshape(B, C_in * K, L)     # ic*K + k ordering

    CK = C_in * K
    CK_pad = ((CK + 7) // 8) * 8                 # sublane-align the contraction dim
    L_lane = max(128, ((L + 127) // 128) * 128)
    xcol = jnp.pad(xcol, ((0, 0), (0, CK_pad - CK), (0, L_lane - L)))
    slab = jnp.transpose(xcol, (1, 0, 2)).reshape(CK_pad, B * L_lane).astype(cd)
    w2d = jnp.pad(weight.reshape(C_out, CK), ((0, 0), (0, CK_pad - CK))).astype(cd)

    W_slab = B * L_lane
    isz = np.dtype(cd).itemsize
    out_isz = np.dtype(x.dtype).itemsize
    per_lane = 2 * (CK_pad * isz + C_out * out_isz)            # double-buffered
    t = max(128, min(W_slab, max_lane_tile,
                     (vmem_budget_bytes // per_lane) // 128 * 128))
    if lane_tile is not None:
        t = lane_tile
    n_tiles = -(-W_slab // t)
    W_padded = n_tiles * t
    if W_padded != W_slab:
        slab = jnp.pad(slab, ((0, 0), (0, W_padded - W_slab)))

    flops = int(2 * C_out * CK_pad * W_padded)
    bytes_accessed = int(slab.size * isz + w2d.size * isz + C_out * 4
                         + C_out * W_padded * out_isz)

    out2d = pl.pallas_call(
        _conv_fused_kernel,
        out_shape=jax.ShapeDtypeStruct((C_out, W_padded), x.dtype),
        grid_spec=pltpu.PrefetchScalarGridSpec(
            num_scalar_prefetch=0,
            grid=(n_tiles,),
            in_specs=[
                pl.BlockSpec((CK_pad, t), lambda i: (0, i)),
                pl.BlockSpec((C_out, CK_pad), lambda i: (0, 0)),
                pl.BlockSpec((C_out, 1), lambda i: (0, 0)),
            ],
            out_specs=pl.BlockSpec((C_out, t), lambda i: (0, i)),
        ),
        compiler_params=pltpu.CompilerParams(
            dimension_semantics=("parallel",),
            vmem_limit_bytes=vmem_limit),
        cost_estimate=pl.CostEstimate(flops=flops, transcendentals=0,
                                      bytes_accessed=bytes_accessed),
    )(slab, w2d, bias_f32)

    out = out2d[:, :W_slab].reshape(C_out, B, L_lane)[:, :, :L]
    return jnp.transpose(out, (1, 0, 2))


def causal_conv1d(x, weight, bias, *, kernel_size, dilation, compute_dtype=None,
                  vmem_budget_bytes=20 * 1024 * 1024, lane_tile=None,
                  small_l_threshold=512, max_lane_tile=65536):
    """x: [B, C_in, L]; weight: [C_out, C_in, K]; bias: [C_out] -> [B, C_out, L]."""
    B, C_in, L = x.shape
    C_out, _, K = weight.shape
    assert K == kernel_size
    padding = dilation * (kernel_size - 1)

    cd = np.dtype(compute_dtype) if compute_dtype is not None else np.dtype(x.dtype)
    bias_f32 = bias.astype(jnp.float32).reshape(C_out, 1)
    vmem_limit = 32 * 1024 * 1024            # safe on v5e (128), v6e (128), v7x (64)

    isz = np.dtype(cd).itemsize
    out_isz = np.dtype(x.dtype).itemsize

    if L > small_l_threshold:
        # Halo path: per-lane VMEM = 2*(in + out) double-buffered + carry.
        per_lane = 2 * (C_in * isz + C_out * out_isz) + C_in * isz
        t = min(max_lane_tile, ((L + 127) // 128) * 128,
                max(128, (vmem_budget_bytes // per_lane) // 128 * 128))
        if lane_tile is not None:
            t = lane_tile
        if padding < t:
            return _forward_halo(x, weight, bias_f32, K=K, dilation=dilation,
                                 cd=cd, lane_tile=t, vmem_limit=vmem_limit)

    return _forward_im2col(x, weight, bias_f32, K=K, dilation=dilation,
                           padding=padding, cd=cd,
                           vmem_budget_bytes=vmem_budget_bytes,
                           vmem_limit=vmem_limit, lane_tile=lane_tile,
                           max_lane_tile=max_lane_tile)


# ---------------------------------------------------------------------------
# Pure-JAX reference (matches nn.Conv1d(padding=d*(K-1)) + right trim)
# ---------------------------------------------------------------------------
def _reference(x, weight, bias, *, kernel_size, dilation):
    B, C_in, L = x.shape
    C_out = weight.shape[0]
    padding = dilation * (kernel_size - 1)
    xpad = jnp.pad(x, ((0, 0), (0, 0), (padding, 0)))
    out = jnp.zeros((B, C_out, L), dtype=jnp.float32)
    for k in range(kernel_size):
        xs = xpad[:, :, k * dilation:k * dilation + L]
        out = out + jnp.einsum('oi,bil->bol', weight[:, :, k], xs)
    return out + bias.reshape(1, C_out, 1)


if __name__ == "__main__":
    key = jax.random.PRNGKey(0)

    def init_params(k, in_ch, out_ch, ksize):
        # CausalConv1d.init_weights: weight ~ N(0, sqrt(2/(K*C_out))), bias = 0.1
        n = ksize * out_ch
        w = jax.random.normal(k, (out_ch, in_ch, ksize), jnp.float32) * math.sqrt(2.0 / n)
        b = jnp.full((out_ch,), 0.1, jnp.float32)
        return w, b

    # --- Test 1: small-L path (batch folded into lanes, fused im2col dot) ----
    B, cin, cout, L, K, dil = 2, 4, 8, 16, 3, 2
    k1, k2, key = jax.random.split(key, 3)
    w, b = init_params(k1, cin, cout, K)
    x = jax.random.normal(k2, (B, cin, L), jnp.float32)
    y = jax.block_until_ready(causal_conv1d(x, w, b, kernel_size=K, dilation=dil))
    y_ref = _reference(x, w, b, kernel_size=K, dilation=dil)
    assert y.shape == (B, cout, L)
    assert jnp.allclose(y, y_ref, atol=1e-5, rtol=1e-5)

    # --- Test 2: halo path, forced multi-tile (exercises cross-tile carry) ---
    B, cin, cout, L, K, dil = 2, 4, 8, 600, 3, 5
    k1, k2, key = jax.random.split(key, 3)
    w, b = init_params(k1, cin, cout, K)
    x = jax.random.normal(k2, (B, cin, L), jnp.float32)
    y = jax.block_until_ready(
        causal_conv1d(x, w, b, kernel_size=K, dilation=dil, lane_tile=128))
    y_ref = _reference(x, w, b, kernel_size=K, dilation=dil)
    assert y.shape == (B, cout, L)
    assert jnp.allclose(y, y_ref, atol=1e-4, rtol=1e-4)

    # --- Test 3: halo path, default VMEM-budget tile (single tile per batch) -
    y = jax.block_until_ready(causal_conv1d(x, w, b, kernel_size=K, dilation=dil))
    assert jnp.allclose(y, y_ref, atol=1e-4, rtol=1e-4)

    print("KERNEL_OK")
</pallas_src>

<mosaic_0001>
module attributes {stable_mosaic.version = 11 : i64} {
  func.func @_conv_fused_kernel(%arg0: i32, %arg1: memref<16x256xf32, #tpu.memory_space<vmem>>, %arg2: memref<8x16xf32, #tpu.memory_space<vmem>>, %arg3: memref<8x1xf32, #tpu.memory_space<vmem>>, %arg4: memref<8x256xf32, #tpu.memory_space<vmem>>) attributes {dimension_semantics = [#tpu.dimension_semantics<parallel>], iteration_bounds = array<i64: 1>, scalar_prefetch = 0 : i64, scratch_operands = 0 : i64, tpu.core_type = #tpu.core_type<tc>, window_params = [{transform_indices = @transform_0, window_bounds = array<i64: 16, 256>}, {pipeline_mode = #tpu.pipeline_mode<synchronous>, transform_indices = @transform_1, window_bounds = array<i64: 8, 16>}, {pipeline_mode = #tpu.pipeline_mode<synchronous>, transform_indices = @transform_2, window_bounds = array<i64: 8, 1>}, {transform_indices = @transform_3, window_bounds = array<i64: 8, 256>}]} {
    %c0 = arith.constant 0 : index
    %c0_0 = arith.constant 0 : index
    %0 = vector.load %arg2[%c0, %c0_0] : memref<8x16xf32, #tpu.memory_space<vmem>>, vector<8x16xf32>
    %c0_1 = arith.constant 0 : index
    %c0_2 = arith.constant 0 : index
    %1 = vector.load %arg1[%c0_1, %c0_2] : memref<16x256xf32, #tpu.memory_space<vmem>>, vector<16x256xf32>
    %cst = arith.constant dense<0.000000e+00> : vector<8x256xf32>
    %2 = tpu.matmul %0, %1, %cst {dimension_numbers = #tpu.dot_dimension_numbers<[1], [0], [0], [1], [0, 0, 1, 1], [], []>} : vector<8x16xf32>, vector<16x256xf32>, vector<8x256xf32> -> vector<8x256xf32>
    %c0_3 = arith.constant 0 : index
    %c0_4 = arith.constant 0 : index
    %3 = vector.load %arg3[%c0_3, %c0_4] : memref<8x1xf32, #tpu.memory_space<vmem>>, vector<8x1xf32>
    %4 = vector.broadcast %3 : vector<8x1xf32> to vector<8x256xf32>
    %5 = arith.addf %2, %4 : vector<8x256xf32>
    %c0_5 = arith.constant 0 : index
    %c0_6 = arith.constant 0 : index
    %6 = vector.load %arg4[%c0_5, %c0_6] : memref<8x256xf32, #tpu.memory_space<vmem>>, vector<8x256xf32>
    tpu.vector_store %arg4[%c0_5, %c0_6], %5 {strides = array<i32>} : memref<8x256xf32, #tpu.memory_space<vmem>>, vector<8x256xf32>,
    return
  }
  func.func @transform_0(%arg0: i32) -> (i32, i32) {
    %c0_i32 = arith.constant 0 : i32
    %c0_i32_0 = arith.constant 0 : i32
    return %c0_i32, %arg0 : i32, i32
  }
  func.func @transform_1(%arg0: i32) -> (i32, i32) {
    %c0_i32 = arith.constant 0 : i32
    %c0_i32_0 = arith.constant 0 : i32
    %c0_i32_1 = arith.constant 0 : i32
    return %c0_i32, %c0_i32_0 : i32, i32
  }
  func.func @transform_2(%arg0: i32) -> (i32, i32) {
    %c0_i32 = arith.constant 0 : i32
    %c0_i32_0 = arith.constant 0 : i32
    %c0_i32_1 = arith.constant 0 : i32
    return %c0_i32, %c0_i32_0 : i32, i32
  }
  func.func @transform_3(%arg0: i32) -> (i32, i32) {
    %c0_i32 = arith.constant 0 : i32
    %c0_i32_0 = arith.constant 0 : i32
    return %c0_i32, %arg0 : i32, i32
  }
}

</mosaic_0001>

<llo_original>
// kernel: tpu_custom_call.1
$region0: #{tpu_custom_call.1}
  #allocation0 [shape = 'u32[]', space=smem, size = 0x4, offset = 0x4, fixed_abs, tag = 'smem constant byte address 0x4 - core index']
  #allocation1 [shape = 'u32[144,128]{1,0:T(1,128)}', space=vmem, size = 0x12000, scoped, tag = 'internal scratch']
  %s0 = inlined_call_operand.hbm [shape: f32[16,256], index: 0, kind: input, shape index: {}]
  %s1 = inlined_call_operand.vmem [shape: f32[8,16], index: 1, kind: input, shape index: {}]
  %s2 = inlined_call_operand.vmem [shape: f32[8,1], index: 2, kind: input, shape index: {}]
  %s3 = inlined_call_operand.hbm [shape: f32[8,256], index: 3, kind: output, shape index: {}]
  %s4 = sld [smem:[#allocation0]]
  $region26: #{tpu_custom_call.1} parent=0
    _
  %s6 = ssub.s32 1, %s4
  %s7 = scalar_select 0, %s6, %s4
  $region1: #{tpu_custom_call.1} parent=0
    #allocation2 [shape = 'u8[16384]{0}', space=vmem, size = 0x4000, scoped, tag = 'input window, operand 0, single buffered']
    #allocation3 [shape = 's32[1]{0}', space=sflag, size = 0x4, scoped, tag = 'scoped memory for tpu_custom_call.1']
    #allocation4 [shape = 's32[1]{0}', space=sflag, size = 0x4, scoped, tag = 'scoped memory for tpu_custom_call.1']
    #allocation5 [shape = 'u8[8192]{0}', space=vmem, size = 0x2000, scoped, tag = 'output window, operand 0, single buffered']
    %8 = vsyncpa [#allocation3], 0
    %9 = vsyncpa [#allocation4], 0
    // Predicated region
    $region2: #{tpu_custom_call.1} parent=1 // pred_check
      _
    $region3: #{tpu_custom_call.1} parent=1 // pred_check_branch
      %11 = sbr.rel (0) target = $region5
    $region4: #{tpu_custom_call.1} parent=1 // pred_region
      %s13 = ssub.s32 512, 512
      %14 = vsyncadd [#allocation3], %s13
      %s15 = sshll.u32 [#allocation2], 4
      %s16 = int_to_ptr.vmem [resolvable:$true] %s15
      %21 = dma.hbm_to_vmem [thread:$0]  %s0, 512, %s16, [#allocation3], 256, 256, 16
    $region5: #{tpu_custom_call.1} parent=1 // pred_fallthru
      _
    // Predicated region
    $region6: #{tpu_custom_call.1} parent=1 // pred_check
      _
    $region7: #{tpu_custom_call.1} parent=1 // pred_check_branch
      %23 = sbr.rel (0) target = $region9
    $region8: #{tpu_custom_call.1} parent=1 // pred_region
      _
    $region9: #{tpu_custom_call.1} parent=1 // pred_fallthru
      _
    // Predicated region
    $region10: #{tpu_custom_call.1} parent=1 // pred_check
      _
    $region11: #{tpu_custom_call.1} parent=1 // pred_check_branch
      %25 = sbr.rel (0) target = $region13
    $region12: #{tpu_custom_call.1} parent=1 // pred_region
      _
    $region13: #{tpu_custom_call.1} parent=1 // pred_fallthru
      _
    // Predicated region
    $region14: #{tpu_custom_call.1} parent=1 // pred_check
      _
    $region15: #{tpu_custom_call.1} parent=1 // pred_check_branch
      %27 = sbr.rel (0) target = $region17
    $region16: #{tpu_custom_call.1} parent=1 // pred_region
      %28 = dma.done [#allocation3], 512
    $region17: #{tpu_custom_call.1} parent=1 // pred_fallthru
      _
    %v29 = vld [vmem:[%s1] sm:$0xff]
    %v30 = vld [vmem:[#allocation2] sm:$0xff]
    %v31 = vld [vmem:[#allocation2 + $0x8] sm:$0xff]
    %v32 = vld [vmem:[#allocation2 + $0x10] sm:$0xff]
    %v33 = vld [vmem:[#allocation2 + $0x18] sm:$0xff]
    %v34 = vld [vmem:[%s2] sm:$0xff]
    %36 = vset.pattern.permute.xlu0 0
    %37 = vperm.xlu0 %36, %v34
    %v38 = vpop.permute.xlu0 %37
    %vm40 = vcmask 130048
    %v42 = vsel %vm40, %v29, 0
    %44 = vmatprep.subr.mxu0 %v31
    %45 = vmatpush1.msra.mxu0 %v30
    %46 = vmatprep.subr.mxu0 %v33
    %47 = vmatpush1.msra.mxu0 %v32
    %48 = vmatprep.subr.mxu0 0.0
    %49 = vmatpush1.msra.mxu0 0.0
    %50 = vmatprep.subr.mxu0 0.0
    %51 = vmatpush1.msra.mxu0 0.0
    %52 = vmatprep.subr.mxu0 0.0
    %53 = vmatpush1.msra.mxu0 0.0
    %54 = vmatprep.subr.mxu0 0.0
    %55 = vmatpush1.msra.mxu0 0.0
    %56 = vmatprep.subr.mxu0 0.0
    %57 = vmatpush1.msra.mxu0 0.0
    %58 = vmatprep.subr.mxu0 0.0
    %59 = vmatpush1.msra.mxu0 0.0
    %60 = vmatprep.subr.mxu0 0.0
    %61 = vmatpush1.msra.mxu0 0.0
    %62 = vmatprep.subr.mxu0 0.0
    %63 = vmatpush1.msra.mxu0 0.0
    %64 = vmatprep.subr.mxu0 0.0
    %65 = vmatpush1.msra.mxu0 0.0
    %66 = vmatprep.subr.mxu0 0.0
    %67 = vmatpush1.msra.mxu0 0.0
    %68 = vmatprep.subr.mxu0 0.0
    %69 = vmatpush1.msra.mxu0 0.0
    %70 = vmatprep.subr.mxu0 0.0
    %71 = vmatpush1.msra.mxu0 0.0
    %72 = vmatprep.subr.mxu0 0.0
    %73 = vmatpush1.msra.mxu0 0.0
    %74 = vmatprep.subr.mxu0 0.0
    %75 = vmatpush1.msra.mxu0 0.0
    %76 = vmatprep.subr.mxu0 0.0
    %77 = vmatpush1.msra.mxu0 0.0
    %78 = vmatprep.subr.mxu0 0.0
    %79 = vmatpush1.msra.mxu0 0.0
    %80 = vmatprep.subr.mxu0 0.0
    %81 = vmatpush1.msra.mxu0 0.0
    %82 = vmatprep.subr.mxu0 0.0
    %83 = vmatpush1.msra.mxu0 0.0
    %84 = vmatprep.subr.mxu0 0.0
    %85 = vmatpush1.msra.mxu0 0.0
    %86 = vmatprep.subr.mxu0 0.0
    %87 = vmatpush1.msra.mxu0 0.0
    %88 = vmatprep.subr.mxu0 0.0
    %89 = vmatpush1.msra.mxu0 0.0
    %90 = vmatprep.subr.mxu0 0.0
    %91 = vmatpush1.msra.mxu0 0.0
    %92 = vmatprep.subr.mxu0 0.0
    %93 = vmatpush1.msra.mxu0 0.0
    %94 = vmatprep.subr.mxu0 0.0
    %95 = vmatpush1.msra.mxu0 0.0
    %96 = vmatprep.subr.mxu0 0.0
    %97 = vmatpush1.msra.mxu0 0.0
    %98 = vmatprep.subr.mxu0 0.0
    %99 = vmatpush1.msra.mxu0 0.0
    %100 = vmatprep.subr.mxu0 0.0
    %101 = vmatpush1.msra.mxu0 0.0
    %102 = vmatprep.subr.mxu0 0.0
    %103 = vmatpush1.msra.mxu0 0.0
    %104 = vmatprep.subr.mxu0 0.0
    %105 = vmatpush1.msra.mxu0 0.0
    %106 = vmatprep.subr.mxu0 0.0
    %107 = vmatpush1.msra.mxu0 0.0
    %108 = vmatprep.mubr.f32.mxu0 0.0
    %109 = vmatmul.mubr.f32.gmra.mrb[0].mxu0 %v42
    %v110 = vpop.f32.mrb[0].mxu0
    %v111 = vadd.f32 %v38, %v110
    %v112 = vpop.f32.mrb[0].mxu0
    %v113 = vadd.f32 %v38, %v112
    %114 = vdwg.mxu0
    %115 = vst [vmem:[#allocation5] sm:$0xff] %v111
    %116 = vst [vmem:[#allocation5 + $0x8] sm:$0xff] %v113
    // Predicated region
    $region18: #{tpu_custom_call.1} parent=1 // pred_check
      _
    $region19: #{tpu_custom_call.1} parent=1 // pred_check_branch
      %118 = sbr.rel (0) target = $region21
    $region20: #{tpu_custom_call.1} parent=1 // pred_region
      %s120 = ssub.s32 256, 256
      %121 = vsyncadd [#allocation4], %s120
      %s123 = sshll.u32 [#allocation5], 4
      %s124 = int_to_ptr.vmem [resolvable:$true] %s123
      %126 = dma.vmem_to_hbm [thread:$0]  %s124, 256, %s3, [#allocation4]
    $region21: #{tpu_custom_call.1} parent=1 // pred_fallthru
      _
    // Predicated region
    $region22: #{tpu_custom_call.1} parent=1 // pred_check
      _
    $region23: #{tpu_custom_call.1} parent=1 // pred_check_branch
      %128 = sbr.rel (0) target = $region25
    $region24: #{tpu_custom_call.1} parent=1 // pred_region
      %129 = dma.done [#allocation4], 256
    $region25: #{tpu_custom_call.1} parent=1 // pred_fallthru
      _
    %130 = vsyncpa [#allocation3], 1
    %131 = vsyncpa [#allocation4], 1

</llo_original>
